<compile_context>
chip_gen: v7x
topology: tpu7x:2x2x1
jax: 0.10.0
libtpu: 0.0.40
codegen_flags: <defaults>
</compile_context>

<pallas_src>
import jax
import jax.numpy as jnp
from jax.experimental import pallas as pl
from jax.experimental.pallas import tpu as pltpu


def _sigmoid(z):
    # EUP-friendly sigmoid: one tanh per gate instead of exp + f32 divide.
    return 0.5 * (jnp.tanh(0.5 * z) + 1.0)


def lstm_cell_kernel(x_ref, h_ref, c_ref, w_ref, b_ref, h_out_ref, c_out_ref):
    x = x_ref[...]          # (TB, H)
    h = h_ref[...]          # (TB, H)
    c = c_ref[...]          # (TB, H)

    # gate order: 0=f, 1=i, 2=Ca, 3=o
    #   w_ref[g]     : W_*h   (TB, H)
    #   w_ref[g + 4] : W_*i   (TB, H)
    #   b_ref[g]     : folded per-feature bias (1, H), broadcast over rows
    def gate_pre(g):
        return w_ref[g] * h + w_ref[g + 4] * x + b_ref[g]

    f_t = _sigmoid(gate_pre(0))
    i_t = _sigmoid(gate_pre(1))
    c_add = jnp.tanh(gate_pre(2))
    o_t = _sigmoid(gate_pre(3))

    c_new = f_t * c + i_t * c_add
    h_new = jnp.tanh(c_new) * o_t

    h_out_ref[...] = h_new
    c_out_ref[...] = c_new


def lstm_cell(x, h, c, w_stack, b_stack, *, block_rows=None):
    """One elementwise LSTM-cell step.

    x, h, c   : (B, H) float32
    w_stack   : (8, B, H) float32  [W_fh, W_ih, W_Ca_h, W_oh, W_fi, W_ii, W_Ca_i, W_oi]
    b_stack   : (4, 1, H) float32  folded per-feature biases [b_f, b_i, b_Ca, b_o]
    Returns (h_new, c_new); h and c buffers are aliased to the outputs.
    """
    B, H = x.shape
    if block_rows is None:
        # ~1 MiB per (TB, H) f32 state tile: near the HBM roofline on v5e/v6e
        # while ~11 double-buffered operand tiles stay well under v7x's 64 MiB.
        block_rows = min(B, max(8, (1 << 20) // (H * 4)))
    assert B % block_rows == 0, "block_rows must divide the batch"
    grid = (B // block_rows,)

    state_spec = pl.BlockSpec((block_rows, H), lambda i: (i, 0))
    w_spec = pl.BlockSpec((8, block_rows, H), lambda i: (0, i, 0))
    b_spec = pl.BlockSpec((4, 1, H), lambda i: (0, 0, 0))

    h_new, c_new = pl.pallas_call(
        lstm_cell_kernel,
        out_shape=(
            jax.ShapeDtypeStruct((B, H), x.dtype),
            jax.ShapeDtypeStruct((B, H), x.dtype),
        ),
        grid=grid,
        in_specs=[state_spec, state_spec, state_spec, w_spec, b_spec],
        out_specs=(state_spec, state_spec),
        # in-place state update, like self.h / self.C in the module:
        #   h (input 1) -> h_new (output 0),  c (input 2) -> c_new (output 1)
        input_output_aliases={1: 0, 2: 1},
        compiler_params=pltpu.CompilerParams(
            dimension_semantics=("parallel",),      # megacore split on v7x
            vmem_limit_bytes=48 * 1024 * 1024,      # > 32 MiB default, < v7x 64 MiB
        ),
    )(x, h, c, w_stack, b_stack)
    return h_new, c_new


def init_params(key, batch, hidden):
    """Deterministic init; returns the packed (8,B,H) weights and (4,1,H) folded biases."""
    kw, kb = jax.random.split(key)
    w_keys = jax.random.split(kw, 8)
    b_keys = jax.random.split(kb, 8)
    # weights: elementwise, same shape as the state
    # order: [W_fh, W_ih, W_Ca_h, W_oh, W_fi, W_ii, W_Ca_i, W_oi]
    weights = [jax.random.normal(k, (batch, hidden), dtype=jnp.float32) * 0.1
               for k in w_keys]
    # biases: per-feature (1, H); order: [b_fh, b_ih, b_Ca_h, b_oh, b_fi, b_ii, b_Ca_i, b_oi]
    biases = [jax.random.normal(k, (1, hidden), dtype=jnp.float32) * 0.1
              for k in b_keys]
    w_stack = jnp.stack(weights)                                      # (8, B, H)
    # fold paired biases ONCE at init time (b_*h + b_*i) -> 4 tensors instead of 8
    b_stack = jnp.stack([biases[g] + biases[g + 4] for g in range(4)])  # (4, 1, H)
    return w_stack, b_stack


def reference(x, h, c, w, b):
    sig = jax.nn.sigmoid
    f_t = sig(w[0] * h + w[4] * x + b[0])
    i_t = sig(w[1] * h + w[5] * x + b[1])
    c_add = jnp.tanh(w[2] * h + w[6] * x + b[2])
    c_new = f_t * c + i_t * c_add
    o_t = sig(w[3] * h + w[7] * x + b[3])
    h_new = jnp.tanh(c_new) * o_t
    return h_new, c_new


if __name__ == "__main__":
    B, H = 16, 128  # small demo shapes; lane-aligned hidden axis
    key = jax.random.PRNGKey(0)
    kx, kh, kc, kp = jax.random.split(key, 4)

    x = jax.random.normal(kx, (B, H), dtype=jnp.float32)
    h0 = jax.random.normal(kh, (B, H), dtype=jnp.float32)
    c0 = jax.random.normal(kc, (B, H), dtype=jnp.float32)
    w_stack, b_stack = init_params(kp, B, H)

    # compute reference BEFORE the kernel call: h0/c0 are donated (aliased to outputs)
    h_ref, c_ref = reference(x, h0, c0, w_stack, b_stack)

    # block_rows=8 -> grid=(2,) to exercise the batch tiling on this tiny demo
    h_new, c_new = lstm_cell(x, h0, c0, w_stack, b_stack, block_rows=8)
    jax.block_until_ready((h_new, c_new))

    assert jnp.allclose(h_new, h_ref, atol=1e-5, rtol=1e-5)
    assert jnp.allclose(c_new, c_ref, atol=1e-5, rtol=1e-5)

    print("KERNEL_OK")
</pallas_src>

<mosaic_0001>
module attributes {stable_mosaic.version = 11 : i64} {
  func.func @lstm_cell_kernel(%arg0: i32, %arg1: memref<8x128xf32, #tpu.memory_space<vmem>>, %arg2: memref<8x128xf32, #tpu.memory_space<vmem>>, %arg3: memref<8x128xf32, #tpu.memory_space<vmem>>, %arg4: memref<8x8x128xf32, #tpu.memory_space<vmem>>, %arg5: memref<4x1x128xf32, #tpu.memory_space<vmem>>, %arg6: memref<8x128xf32, #tpu.memory_space<vmem>>, %arg7: memref<8x128xf32, #tpu.memory_space<vmem>>) attributes {dimension_semantics = [#tpu.dimension_semantics<parallel>], iteration_bounds = array<i64: 2>, scalar_prefetch = 0 : i64, scratch_operands = 0 : i64, tpu.core_type = #tpu.core_type<tc>, window_params = [{transform_indices = @transform_0, window_bounds = array<i64: 8, 128>}, {transform_indices = @transform_1, window_bounds = array<i64: 8, 128>}, {transform_indices = @transform_2, window_bounds = array<i64: 8, 128>}, {transform_indices = @transform_3, window_bounds = array<i64: 8, 8, 128>}, {pipeline_mode = #tpu.pipeline_mode<synchronous>, transform_indices = @transform_4, window_bounds = array<i64: 4, 1, 128>}, {transform_indices = @transform_5, window_bounds = array<i64: 8, 128>}, {transform_indices = @transform_6, window_bounds = array<i64: 8, 128>}]} {
    %c0 = arith.constant 0 : index
    %c0_0 = arith.constant 0 : index
    %0 = vector.load %arg1[%c0, %c0_0] : memref<8x128xf32, #tpu.memory_space<vmem>>, vector<8x128xf32>
    %c0_1 = arith.constant 0 : index
    %c0_2 = arith.constant 0 : index
    %1 = vector.load %arg2[%c0_1, %c0_2] : memref<8x128xf32, #tpu.memory_space<vmem>>, vector<8x128xf32>
    %c0_3 = arith.constant 0 : index
    %c0_4 = arith.constant 0 : index
    %2 = vector.load %arg3[%c0_3, %c0_4] : memref<8x128xf32, #tpu.memory_space<vmem>>, vector<8x128xf32>
    %c0_5 = arith.constant 0 : index
    %c0_6 = arith.constant 0 : index
    %c0_7 = arith.constant 0 : index
    %3 = vector.load %arg4[%c0_5, %c0_6, %c0_7] : memref<8x8x128xf32, #tpu.memory_space<vmem>>, vector<1x8x128xf32>
    %4 = vector.shape_cast %3 : vector<1x8x128xf32> to vector<8x128xf32>
    %5 = arith.mulf %4, %1 : vector<8x128xf32>
    %c4 = arith.constant 4 : index
    %c0_8 = arith.constant 0 : index
    %c0_9 = arith.constant 0 : index
    %6 = vector.load %arg4[%c4, %c0_8, %c0_9] : memref<8x8x128xf32, #tpu.memory_space<vmem>>, vector<1x8x128xf32>
    %7 = vector.shape_cast %6 : vector<1x8x128xf32> to vector<8x128xf32>
    %8 = arith.mulf %7, %0 : vector<8x128xf32>
    %9 = arith.addf %5, %8 : vector<8x128xf32>
    %c0_10 = arith.constant 0 : index
    %c0_11 = arith.constant 0 : index
    %c0_12 = arith.constant 0 : index
    %10 = vector.load %arg5[%c0_10, %c0_11, %c0_12] : memref<4x1x128xf32, #tpu.memory_space<vmem>>, vector<1x1x128xf32>
    %11 = vector.shape_cast %10 : vector<1x1x128xf32> to vector<1x128xf32>
    %12 = vector.broadcast %11 : vector<1x128xf32> to vector<8x128xf32>
    %13 = arith.addf %9, %12 : vector<8x128xf32>
    %cst = arith.constant 5.000000e-01 : f32
    %14 = vector.broadcast %cst : f32 to vector<8x128xf32>
    %15 = arith.mulf %14, %13 : vector<8x128xf32>
    %16 = math.tanh %15 : vector<8x128xf32>
    %cst_13 = arith.constant 1.000000e+00 : f32
    %17 = vector.broadcast %cst_13 : f32 to vector<8x128xf32>
    %18 = arith.addf %16, %17 : vector<8x128xf32>
    %cst_14 = arith.constant 5.000000e-01 : f32
    %19 = vector.broadcast %cst_14 : f32 to vector<8x128xf32>
    %20 = arith.mulf %19, %18 : vector<8x128xf32>
    %c1 = arith.constant 1 : index
    %c0_15 = arith.constant 0 : index
    %c0_16 = arith.constant 0 : index
    %21 = vector.load %arg4[%c1, %c0_15, %c0_16] : memref<8x8x128xf32, #tpu.memory_space<vmem>>, vector<1x8x128xf32>
    %22 = vector.shape_cast %21 : vector<1x8x128xf32> to vector<8x128xf32>
    %23 = arith.mulf %22, %1 : vector<8x128xf32>
    %c5 = arith.constant 5 : index
    %c0_17 = arith.constant 0 : index
    %c0_18 = arith.constant 0 : index
    %24 = vector.load %arg4[%c5, %c0_17, %c0_18] : memref<8x8x128xf32, #tpu.memory_space<vmem>>, vector<1x8x128xf32>
    %25 = vector.shape_cast %24 : vector<1x8x128xf32> to vector<8x128xf32>
    %26 = arith.mulf %25, %0 : vector<8x128xf32>
    %27 = arith.addf %23, %26 : vector<8x128xf32>
    %c1_19 = arith.constant 1 : index
    %c0_20 = arith.constant 0 : index
    %c0_21 = arith.constant 0 : index
    %28 = vector.load %arg5[%c1_19, %c0_20, %c0_21] : memref<4x1x128xf32, #tpu.memory_space<vmem>>, vector<1x1x128xf32>
    %29 = vector.shape_cast %28 : vector<1x1x128xf32> to vector<1x128xf32>
    %30 = vector.broadcast %29 : vector<1x128xf32> to vector<8x128xf32>
    %31 = arith.addf %27, %30 : vector<8x128xf32>
    %cst_22 = arith.constant 5.000000e-01 : f32
    %32 = vector.broadcast %cst_22 : f32 to vector<8x128xf32>
    %33 = arith.mulf %32, %31 : vector<8x128xf32>
    %34 = math.tanh %33 : vector<8x128xf32>
    %cst_23 = arith.constant 1.000000e+00 : f32
    %35 = vector.broadcast %cst_23 : f32 to vector<8x128xf32>
    %36 = arith.addf %34, %35 : vector<8x128xf32>
    %cst_24 = arith.constant 5.000000e-01 : f32
    %37 = vector.broadcast %cst_24 : f32 to vector<8x128xf32>
    %38 = arith.mulf %37, %36 : vector<8x128xf32>
    %c2 = arith.constant 2 : index
    %c0_25 = arith.constant 0 : index
    %c0_26 = arith.constant 0 : index
    %39 = vector.load %arg4[%c2, %c0_25, %c0_26] : memref<8x8x128xf32, #tpu.memory_space<vmem>>, vector<1x8x128xf32>
    %40 = vector.shape_cast %39 : vector<1x8x128xf32> to vector<8x128xf32>
    %41 = arith.mulf %40, %1 : vector<8x128xf32>
    %c6 = arith.constant 6 : index
    %c0_27 = arith.constant 0 : index
    %c0_28 = arith.constant 0 : index
    %42 = vector.load %arg4[%c6, %c0_27, %c0_28] : memref<8x8x128xf32, #tpu.memory_space<vmem>>, vector<1x8x128xf32>
    %43 = vector.shape_cast %42 : vector<1x8x128xf32> to vector<8x128xf32>
    %44 = arith.mulf %43, %0 : vector<8x128xf32>
    %45 = arith.addf %41, %44 : vector<8x128xf32>
    %c2_29 = arith.constant 2 : index
    %c0_30 = arith.constant 0 : index
    %c0_31 = arith.constant 0 : index
    %46 = vector.load %arg5[%c2_29, %c0_30, %c0_31] : memref<4x1x128xf32, #tpu.memory_space<vmem>>, vector<1x1x128xf32>
    %47 = vector.shape_cast %46 : vector<1x1x128xf32> to vector<1x128xf32>
    %48 = vector.broadcast %47 : vector<1x128xf32> to vector<8x128xf32>
    %49 = arith.addf %45, %48 : vector<8x128xf32>
    %50 = math.tanh %49 : vector<8x128xf32>
    %c3 = arith.constant 3 : index
    %c0_32 = arith.constant 0 : index
    %c0_33 = arith.constant 0 : index
    %51 = vector.load %arg4[%c3, %c0_32, %c0_33] : memref<8x8x128xf32, #tpu.memory_space<vmem>>, vector<1x8x128xf32>
    %52 = vector.shape_cast %51 : vector<1x8x128xf32> to vector<8x128xf32>
    %53 = arith.mulf %52, %1 : vector<8x128xf32>
    %c7 = arith.constant 7 : index
    %c0_34 = arith.constant 0 : index
    %c0_35 = arith.constant 0 : index
    %54 = vector.load %arg4[%c7, %c0_34, %c0_35] : memref<8x8x128xf32, #tpu.memory_space<vmem>>, vector<1x8x128xf32>
    %55 = vector.shape_cast %54 : vector<1x8x128xf32> to vector<8x128xf32>
    %56 = arith.mulf %55, %0 : vector<8x128xf32>
    %57 = arith.addf %53, %56 : vector<8x128xf32>
    %c3_36 = arith.constant 3 : index
    %c0_37 = arith.constant 0 : index
    %c0_38 = arith.constant 0 : index
    %58 = vector.load %arg5[%c3_36, %c0_37, %c0_38] : memref<4x1x128xf32, #tpu.memory_space<vmem>>, vector<1x1x128xf32>
    %59 = vector.shape_cast %58 : vector<1x1x128xf32> to vector<1x128xf32>
    %60 = vector.broadcast %59 : vector<1x128xf32> to vector<8x128xf32>
    %61 = arith.addf %57, %60 : vector<8x128xf32>
    %cst_39 = arith.constant 5.000000e-01 : f32
    %62 = vector.broadcast %cst_39 : f32 to vector<8x128xf32>
    %63 = arith.mulf %62, %61 : vector<8x128xf32>
    %64 = math.tanh %63 : vector<8x128xf32>
    %cst_40 = arith.constant 1.000000e+00 : f32
    %65 = vector.broadcast %cst_40 : f32 to vector<8x128xf32>
    %66 = arith.addf %64, %65 : vector<8x128xf32>
    %cst_41 = arith.constant 5.000000e-01 : f32
    %67 = vector.broadcast %cst_41 : f32 to vector<8x128xf32>
    %68 = arith.mulf %67, %66 : vector<8x128xf32>
    %69 = arith.mulf %20, %2 : vector<8x128xf32>
    %70 = arith.mulf %38, %50 : vector<8x128xf32>
    %71 = arith.addf %69, %70 : vector<8x128xf32>
    %72 = math.tanh %71 : vector<8x128xf32>
    %73 = arith.mulf %72, %68 : vector<8x128xf32>
    %c0_42 = arith.constant 0 : index
    %c0_43 = arith.constant 0 : index
    %74 = vector.load %arg6[%c0_42, %c0_43] : memref<8x128xf32, #tpu.memory_space<vmem>>, vector<8x128xf32>
    tpu.vector_store %arg6[%c0_42, %c0_43], %73 {strides = array<i32>} : memref<8x128xf32, #tpu.memory_space<vmem>>, vector<8x128xf32>,
    %c0_44 = arith.constant 0 : index
    %c0_45 = arith.constant 0 : index
    %75 = vector.load %arg7[%c0_44, %c0_45] : memref<8x128xf32, #tpu.memory_space<vmem>>, vector<8x128xf32>
    tpu.vector_store %arg7[%c0_44, %c0_45], %71 {strides = array<i32>} : memref<8x128xf32, #tpu.memory_space<vmem>>, vector<8x128xf32>,
    return
  }
  func.func @transform_0(%arg0: i32) -> (i32, i32) {
    %c0_i32 = arith.constant 0 : i32
    %c0_i32_0 = arith.constant 0 : i32
    return %arg0, %c0_i32 : i32, i32
  }
  func.func @transform_1(%arg0: i32) -> (i32, i32) {
    %c0_i32 = arith.constant 0 : i32
    %c0_i32_0 = arith.constant 0 : i32
    return %arg0, %c0_i32 : i32, i32
  }
  func.func @transform_2(%arg0: i32) -> (i32, i32) {
    %c0_i32 = arith.constant 0 : i32
    %c0_i32_0 = arith.constant 0 : i32
    return %arg0, %c0_i32 : i32, i32
  }
  func.func @transform_3(%arg0: i32) -> (i32, i32, i32) {
    %c0_i32 = arith.constant 0 : i32
    %c0_i32_0 = arith.constant 0 : i32
    %c0_i32_1 = arith.constant 0 : i32
    return %c0_i32, %arg0, %c0_i32_0 : i32, i32, i32
  }
  func.func @transform_4(%arg0: i32) -> (i32, i32, i32) {
    %c0_i32 = arith.constant 0 : i32
    %c0_i32_0 = arith.constant 0 : i32
    %c0_i32_1 = arith.constant 0 : i32
    %c0_i32_2 = arith.constant 0 : i32
    return %c0_i32, %c0_i32_0, %c0_i32_1 : i32, i32, i32
  }
  func.func @transform_5(%arg0: i32) -> (i32, i32) {
    %c0_i32 = arith.constant 0 : i32
    %c0_i32_0 = arith.constant 0 : i32
    return %arg0, %c0_i32 : i32, i32
  }
  func.func @transform_6(%arg0: i32) -> (i32, i32) {
    %c0_i32 = arith.constant 0 : i32
    %c0_i32_0 = arith.constant 0 : i32
    return %arg0, %c0_i32 : i32, i32
  }
}

</mosaic_0001>

<llo_original>
// kernel: tpu_custom_call.1
$region0: #{tpu_custom_call.1}
  #allocation0 [shape = 'u32[]', space=smem, size = 0x4, offset = 0x4, fixed_abs, tag = 'smem constant byte address 0x4 - core index']
  #allocation1 [shape = 'u32[144,128]{1,0:T(1,128)}', space=vmem, size = 0x12000, scoped, tag = 'internal scratch']
  %s0 = inlined_call_operand.vmem [shape: f32[16,128], index: 0, kind: input, shape index: {}]
  %s1 = inlined_call_operand.hbm [shape: f32[16,128], index: 1, kind: input, shape index: {}, may-alias: {1,5}]
  %s2 = inlined_call_operand.hbm [shape: f32[16,128], index: 2, kind: input, shape index: {}, may-alias: {2,6}]
  %s3 = inlined_call_operand.hbm [shape: f32[8,16,128], index: 3, kind: input, shape index: {}]
  %s4 = inlined_call_operand.vmem [shape: f32[4,1,128], index: 4, kind: input, shape index: {}]
  %s5 = inlined_call_operand.hbm [shape: f32[16,128], index: 5, kind: output, shape index: {0}, may-alias: {1,5}]
  %s6 = inlined_call_operand.hbm [shape: f32[16,128], index: 6, kind: output, shape index: {1}, may-alias: {2,6}]
  %7 = xla_tuple %s5, %s6
  %s8 = sld [smem:[#allocation0]]
  $region73: #{tpu_custom_call.1} parent=0
    _
  %s10 = ssub.s32 1, %s8
  %s11 = scalar_select 0, %s10, %s8
  $region1: #{tpu_custom_call.1} parent=0
    #allocation2 [shape = 'u8[8192]{0}', space=vmem, size = 0x2000, scoped, tag = 'input window, operand 1']
    #allocation3 [shape = 's32[2]{0}', space=sflag, size = 0x8, scoped, tag = 'scoped memory for tpu_custom_call.1']
    #allocation4 [shape = 's32[2]{0}', space=sflag, size = 0x8, scoped, tag = 'scoped memory for tpu_custom_call.1']
    #allocation5 [shape = 'u8[8192]{0}', space=vmem, size = 0x2000, scoped, tag = 'input window, operand 2']
    #allocation6 [shape = 's32[2]{0}', space=sflag, size = 0x8, scoped, tag = 'scoped memory for tpu_custom_call.1']
    #allocation7 [shape = 'u8[65536]{0}', space=vmem, size = 0x10000, scoped, tag = 'input window, operand 3']
    #allocation8 [shape = 'u8[8192]{0}', space=vmem, size = 0x2000, scoped, tag = 'output window, operand 0']
    #allocation9 [shape = 'u8[8192]{0}', space=vmem, size = 0x2000, scoped, tag = 'output window, operand 1']
    #allocation10 [shape = 's32[2]{0}', space=sflag, size = 0x8, scoped, tag = 'scoped memory for tpu_custom_call.1']
    %12 = vsyncpa [#allocation3], 0
    %s13 = scalar_lea.sflag [#allocation3], 1
    %14 = vsyncpa %s13, 0
    %15 = vsyncpa [#allocation6], 0
    %s16 = scalar_lea.sflag [#allocation6], 1
    %17 = vsyncpa %s16, 0
    %18 = vsyncpa [#allocation4], 0
    %s19 = scalar_lea.sflag [#allocation4], 1
    %20 = vsyncpa %s19, 0
    %21 = vsyncpa [#allocation10], 0
    %s22 = scalar_lea.sflag [#allocation10], 1
    %23 = vsyncpa %s22, 0
    loop: start=0, step=1, limit=4
    $region2: #{tpu_custom_call.1} parent=1 // loop_pre_header
      _
    $region3: #{tpu_custom_call.1} parent=1 // loop_header
      %s25 = sphi 0, %s29
      %p26 = scmp.ge.s32.totalorder %s25, 4
      %s35 = sphi 0, %s37
      %s38 = sphi 0, %s35
      %s39 = sphi 0, %s38
      %s55 = sphi 0, %s39
      %s61 = sphi 0, %s63
      %s64 = sphi 0, %s61
      %s65 = sphi 0, %s64
      %s81 = sphi 0, %s65
      %s87 = sphi 0, %s89
      %s90 = sphi 0, %s87
      %s91 = sphi 0, %s90
      %s107 = sphi 0, %s91
      %s113 = sphi 0, %s115
      %s116 = sphi 0, %s113
      %s117 = sphi 0, %s116
      %s133 = sphi 0, %s117
      %s137 = sphi 0, %s137
      %s139 = sphi 0, %s137
      %s140 = sphi 0, %s139
      %s154 = sphi 0, %s140
      %s160 = sphi 0, %s162
      %s163 = sphi 0, %s160
      %s164 = sphi 0, %s163
      %s180 = sphi 0, %s164
      %s186 = sphi 0, %s188
      %s189 = sphi 0, %s186
      %s190 = sphi 0, %s189
      %s206 = sphi 0, %s190
    $region4: #{tpu_custom_call.1} parent=1 // loop_header_branch
      %28 = sbr.rel (%p26) target = $region8
    $region5: #{tpu_custom_call.1} parent=1 // loop_body
      %s30 = ssub.s32 %s25, 1
      %s31 = ssub.s32 %s25, 2
      %s32 = sadd.s32 %s25, 1
      %s33 = ssub.s32 %s25, %s32
      %p34 = scmp.eq.s32.totalorder %s33, 0
      %s36 = sadd.s32 %s35, 1
      %s37 = scalar_select %p34, %s35, %s36
      %p40 = pneg %p34
      %p41 = scmp.eq.s32.totalorder %s25, 1
      %p42 = por %p40, %p41
      %p43 = scmp.ne.s32.totalorder %s35, %s38
      %p44 = scmp.eq.s32.totalorder %s25, 0
      %p45 = por %p43, %p44
      %p46 = scmp.ne.s32.totalorder %s35, %s38
      %p47 = scmp.eq.s32.totalorder %s30, 1
      %p48 = por %p46, %p47
      %p49 = scmp.ne.s32.totalorder %s38, %s39
      %p50 = scmp.eq.s32.totalorder %s30, 0
      %p51 = por %p49, %p50
      %p52 = scmp.ne.s32.totalorder %s38, %s39
      %p53 = scmp.eq.s32.totalorder %s31, 1
      %p54 = por %p52, %p53
      %p56 = scmp.ne.s32.totalorder %s39, %s55
      %p57 = scmp.eq.s32.totalorder %s31, 0
      %p58 = por %p56, %p57
      %s59 = ssub.s32 %s25, %s32
      %p60 = scmp.eq.s32.totalorder %s59, 0
      %s62 = sadd.s32 %s61, 1
      %s63 = scalar_select %p60, %s61, %s62
      %p66 = pneg %p60
      %p67 = scmp.eq.s32.totalorder %s25, 1
      %p68 = por %p66, %p67
      %p69 = scmp.ne.s32.totalorder %s61, %s64
      %p70 = scmp.eq.s32.totalorder %s25, 0
      %p71 = por %p69, %p70
      %p72 = scmp.ne.s32.totalorder %s61, %s64
      %p73 = scmp.eq.s32.totalorder %s30, 1
      %p74 = por %p72, %p73
      %p75 = scmp.ne.s32.totalorder %s64, %s65
      %p76 = scmp.eq.s32.totalorder %s30, 0
      %p77 = por %p75, %p76
      %p78 = scmp.ne.s32.totalorder %s64, %s65
      %p79 = scmp.eq.s32.totalorder %s31, 1
      %p80 = por %p78, %p79
      %p82 = scmp.ne.s32.totalorder %s65, %s81
      %p83 = scmp.eq.s32.totalorder %s31, 0
      %p84 = por %p82, %p83
      %s85 = ssub.s32 %s25, %s32
      %p86 = scmp.eq.s32.totalorder %s85, 0
      %s88 = sadd.s32 %s87, 1
      %s89 = scalar_select %p86, %s87, %s88
      %p92 = pneg %p86
      %p93 = scmp.eq.s32.totalorder %s25, 1
      %p94 = por %p92, %p93
      %p95 = scmp.ne.s32.totalorder %s87, %s90
      %p96 = scmp.eq.s32.totalorder %s25, 0
      %p97 = por %p95, %p96
      %p98 = scmp.ne.s32.totalorder %s87, %s90
      %p99 = scmp.eq.s32.totalorder %s30, 1
      %p100 = por %p98, %p99
      %p101 = scmp.ne.s32.totalorder %s90, %s91
      %p102 = scmp.eq.s32.totalorder %s30, 0
      %p103 = por %p101, %p102
      %p104 = scmp.ne.s32.totalorder %s90, %s91
      %p105 = scmp.eq.s32.totalorder %s31, 1
      %p106 = por %p104, %p105
      %p108 = scmp.ne.s32.totalorder %s91, %s107
      %p109 = scmp.eq.s32.totalorder %s31, 0
      %p110 = por %p108, %p109
      %s111 = ssub.s32 %s25, %s32
      %p112 = scmp.eq.s32.totalorder %s111, 0
      %s114 = sadd.s32 %s113, 1
      %s115 = scalar_select %p112, %s113, %s114
      %p118 = pneg %p112
      %p119 = scmp.eq.s32.totalorder %s25, 1
      %p120 = por %p118, %p119
      %p121 = scmp.ne.s32.totalorder %s113, %s116
      %p122 = scmp.eq.s32.totalorder %s25, 0
      %p123 = por %p121, %p122
      %p124 = scmp.ne.s32.totalorder %s113, %s116
      %p125 = scmp.eq.s32.totalorder %s30, 1
      %p126 = por %p124, %p125
      %p127 = scmp.ne.s32.totalorder %s116, %s117
      %p128 = scmp.eq.s32.totalorder %s30, 0
      %p129 = por %p127, %p128
      %p130 = scmp.ne.s32.totalorder %s116, %s117
      %p131 = scmp.eq.s32.totalorder %s31, 1
      %p132 = por %p130, %p131
      %p134 = scmp.ne.s32.totalorder %s117, %s133
      %p135 = scmp.eq.s32.totalorder %s31, 0
      %p136 = por %p134, %p135
      %s138 = sadd.s32 %s137, 1
      %p141 = scmp.eq.s32.totalorder %s25, 1
      %p142 = scmp.ne.s32.totalorder %s137, %s139
      %p143 = scmp.eq.s32.totalorder %s25, 0
      %p144 = por %p142, %p143
      %p145 = scmp.ne.s32.totalorder %s137, %s139
      %p146 = scmp.eq.s32.totalorder %s30, 1
      %p147 = por %p145, %p146
      %p148 = scmp.ne.s32.totalorder %s139, %s140
      %p149 = scmp.eq.s32.totalorder %s30, 0
      %p150 = por %p148, %p149
      %p151 = scmp.ne.s32.totalorder %s139, %s140
      %p152 = scmp.eq.s32.totalorder %s31, 1
      %p153 = por %p151, %p152
      %p155 = scmp.ne.s32.totalorder %s140, %s154
      %p156 = scmp.eq.s32.totalorder %s31, 0
      %p157 = por %p155, %p156
      %s158 = ssub.s32 %s25, %s32
      %p159 = scmp.eq.s32.totalorder %s158, 0
      %s161 = sadd.s32 %s160, 1
      %s162 = scalar_select %p159, %s160, %s161
      %p165 = pneg %p159
      %p166 = scmp.eq.s32.totalorder %s25, 1
      %p167 = por %p165, %p166
      %p168 = scmp.ne.s32.totalorder %s160, %s163
      %p169 = scmp.eq.s32.totalorder %s25, 0
      %p170 = por %p168, %p169
      %p171 = scmp.ne.s32.totalorder %s160, %s163
      %p172 = scmp.eq.s32.totalorder %s30, 1
      %p173 = por %p171, %p172
      %p174 = scmp.ne.s32.totalorder %s163, %s164
      %p175 = scmp.eq.s32.totalorder %s30, 0
      %p176 = por %p174, %p175
      %p177 = scmp.ne.s32.totalorder %s163, %s164
      %p178 = scmp.eq.s32.totalorder %s31, 1
      %p179 = por %p177, %p178
      %p181 = scmp.ne.s32.totalorder %s164, %s180
      %p182 = scmp.eq.s32.totalorder %s31, 0
      %p183 = por %p181, %p182
      %s184 = ssub.s32 %s25, %s32
      %p185 = scmp.eq.s32.totalorder %s184, 0
      %s187 = sadd.s32 %s186, 1
      %s188 = scalar_select %p185, %s186, %s187
      %p191 = pneg %p185
      %p192 = scmp.eq.s32.totalorder %s25, 1
      %p193 = por %p191, %p192
      %p194 = scmp.ne.s32.totalorder %s186, %s189
      %p195 = scmp.eq.s32.totalorder %s25, 0
      %p196 = por %p194, %p195
      %p197 = scmp.ne.s32.totalorder %s186, %s189
      %p198 = scmp.eq.s32.totalorder %s30, 1
      %p199 = por %p197, %p198
      %p200 = scmp.ne.s32.totalorder %s189, %s190
      %p201 = scmp.eq.s32.totalorder %s30, 0
      %p202 = por %p200, %p201
      %p203 = scmp.ne.s32.totalorder %s189, %s190
      %p204 = scmp.eq.s32.totalorder %s31, 1
      %p205 = por %p203, %p204
      %p207 = scmp.ne.s32.totalorder %s190, %s206
      %p208 = scmp.eq.s32.totalorder %s31, 0
      %p209 = por %p207, %p208
      %p210 = scmp.le.s32.totalorder 1, %s25
      %p211 = scmp.lt.s32.totalorder %s25, 3
      %p212 = pnand %p210, %p211
      %p213 = pneg %p212
      // Predicated region
      $region9: #{tpu_custom_call.1} parent=5 // pred_check
        _
      $region10: #{tpu_custom_call.1} parent=5 // pred_check_branch
        %215 = sbr.rel (%p212) target = $region12
      $region11: #{tpu_custom_call.1} parent=5 // pred_region
        %s216 = ssub.s32 %s25, 1
        // Predicated region
        $region13: #{tpu_custom_call.1} parent=11 // pred_check
          %p217 = pneg %p150
        $region14: #{tpu_custom_call.1} parent=11 // pred_check_branch
          %219 = sbr.rel (%p217) target = $region16
        $region15: #{tpu_custom_call.1} parent=11 // pred_region
          _
        $region16: #{tpu_custom_call.1} parent=11 // pred_fallthru
          _
      $region12: #{tpu_custom_call.1} parent=5 // pred_fallthru
        _
      %p220 = scmp.lt.s32.totalorder %s25, 2
      // Predicated region
      $region17: #{tpu_custom_call.1} parent=5 // pred_check
        %p221 = pneg %p220
      $region18: #{tpu_custom_call.1} parent=5 // pred_check_branch
        %223 = sbr.rel (%p221) target = $region20
      $region19: #{tpu_custom_call.1} parent=5 // pred_region
        // Predicated region
        $region21: #{tpu_custom_call.1} parent=19 // pred_check
          %p224 = pneg %p45
        $region22: #{tpu_custom_call.1} parent=19 // pred_check_branch
          %226 = sbr.rel (%p224) target = $region24
        $region23: #{tpu_custom_call.1} parent=19 // pred_region
          %p227 = scmp.lt.s32.totalorder %s25, 1
          %s228 = scalar_select %p227, %s25, 1
          %s229 = smul.addr %s228, 8
          %s230 = scalar_lea.vmem %s0, %s229
        $region24: #{tpu_custom_call.1} parent=19 // pred_fallthru
          _
        // Predicated region
        $region25: #{tpu_custom_call.1} parent=19 // pred_check
          %p231 = pneg %p71
        $region26: #{tpu_custom_call.1} parent=19 // pred_check_branch
          %233 = sbr.rel (%p231) target = $region28
        $region27: #{tpu_custom_call.1} parent=19 // pred_region
          %s234 = sand.u32 %s61, 1
          %s235 = scalar_lea.sflag [#allocation3], %s234
          %s236 = sand.u32 %s61, 1
          %s237 = smul.addr %s236, 8
          %s238 = scalar_lea.vmem [#allocation2], %s237
          %s240 = ssub.s32 128, 128
          %241 = vsyncadd %s235, %s240
          %s242 = smul.addr %s25, 128
          %s243 = scalar_lea.hbm %s1, %s242
          %s245 = sshll.u32 %s238, 4
          %s246 = int_to_ptr.vmem [resolvable:$true] %s245
          %248 = dma.hbm_to_vmem [thread:$0]  %s243, 128, %s246, %s235
        $region28: #{tpu_custom_call.1} parent=19 // pred_fallthru
          _
        // Predicated region
        $region29: #{tpu_custom_call.1} parent=19 // pred_check
          %p249 = pneg %p97
        $region30: #{tpu_custom_call.1} parent=19 // pred_check_branch
          %251 = sbr.rel (%p249) target = $region32
        $region31: #{tpu_custom_call.1} parent=19 // pred_region
          %s252 = sand.u32 %s25, 1
          %s253 = scalar_lea.sflag [#allocation6], %s252
          %s254 = sand.u32 %s87, 1
          %s255 = smul.addr %s254, 8
          %s256 = scalar_lea.vmem [#allocation5], %s255
          %s258 = ssub.s32 128, 128
          %259 = vsyncadd %s253, %s258
          %s260 = smul.addr %s25, 128
          %s261 = scalar_lea.hbm %s2, %s260
          %s263 = sshll.u32 %s256, 4
          %s264 = int_to_ptr.vmem [resolvable:$true] %s263
          %266 = dma.hbm_to_vmem [thread:$0]  %s261, 128, %s264, %s253
        $region32: #{tpu_custom_call.1} parent=19 // pred_fallthru
          _
        // Predicated region
        $region33: #{tpu_custom_call.1} parent=19 // pred_check
          %p267 = pneg %p123
        $region34: #{tpu_custom_call.1} parent=19 // pred_check_branch
          %269 = sbr.rel (%p267) target = $region36
        $region35: #{tpu_custom_call.1} parent=19 // pred_region
          %s270 = sand.u32 %s25, 1
          %s271 = scalar_lea.sflag [#allocation6], %s270
          %s272 = sand.u32 %s113, 1
          %s273 = smul.addr %s272, 64
          %s274 = scalar_lea.vmem [#allocation7], %s273
          %s276 = ssub.s32 1024, 1024
          %277 = vsyncadd %s271, %s276
          %s278 = smul.addr %s25, 128
          %s279 = scalar_lea.hbm %s3, %s278
          %s280 = sshll.u32 %s274, 4
          %s281 = int_to_ptr.vmem [resolvable:$true] %s280
          %286 = dma.hbm_to_vmem [thread:$0]  %s279, 1024, %s281, %s271, 256, 128, 8
        $region36: #{tpu_custom_call.1} parent=19 // pred_fallthru
          _
      $region20: #{tpu_custom_call.1} parent=5 // pred_fallthru
        _
      %p287 = scmp.le.s32.totalorder 1, %s25
      %p288 = scmp.lt.s32.totalorder %s25, 3
      %p289 = pnand %p287, %p288
      %p290 = pneg %p289
      // Predicated region
      $region37: #{tpu_custom_call.1} parent=5 // pred_check
        _
      $region38: #{tpu_custom_call.1} parent=5 // pred_check_branch
        %292 = sbr.rel (%p289) target = $region40
      $region39: #{tpu_custom_call.1} parent=5 // pred_region
        %s293 = ssub.s32 %s25, 1
        %s294 = sand.u32 %s64, 1
        %s295 = scalar_lea.sflag [#allocation3], %s294
        %s296 = sand.u32 %s64, 1
        %s297 = smul.addr %s296, 8
        %s298 = scalar_lea.vmem [#allocation2], %s297
        // Predicated region
        $region41: #{tpu_custom_call.1} parent=39 // pred_check
          %p299 = pneg %p77
        $region42: #{tpu_custom_call.1} parent=39 // pred_check_branch
          %301 = sbr.rel (%p299) target = $region44
        $region43: #{tpu_custom_call.1} parent=39 // pred_region
          %302 = dma.done %s295, 128
        $region44: #{tpu_custom_call.1} parent=39 // pred_fallthru
          _
        %s303 = sand.u32 %s30, 1
        %s304 = scalar_lea.sflag [#allocation6], %s303
        %s305 = sand.u32 %s90, 1
        %s306 = smul.addr %s305, 8
        %s307 = scalar_lea.vmem [#allocation5], %s306
        // Predicated region
        $region45: #{tpu_custom_call.1} parent=39 // pred_check
          %p308 = pneg %p103
        $region46: #{tpu_custom_call.1} parent=39 // pred_check_branch
          %310 = sbr.rel (%p308) target = $region48
        $region47: #{tpu_custom_call.1} parent=39 // pred_region
          %311 = dma.done %s304, 128
        $region48: #{tpu_custom_call.1} parent=39 // pred_fallthru
          _
        %s312 = sand.u32 %s30, 1
        %s313 = scalar_lea.sflag [#allocation6], %s312
        %s314 = sand.u32 %s116, 1
        %s315 = smul.addr %s314, 64
        %s316 = scalar_lea.vmem [#allocation7], %s315
        // Predicated region
        $region49: #{tpu_custom_call.1} parent=39 // pred_check
          %p317 = pneg %p129
        $region50: #{tpu_custom_call.1} parent=39 // pred_check_branch
          %319 = sbr.rel (%p317) target = $region52
        $region51: #{tpu_custom_call.1} parent=39 // pred_region
          %320 = dma.done %s313, 1024
        $region52: #{tpu_custom_call.1} parent=39 // pred_fallthru
          _
        %p321 = scmp.lt.s32.totalorder %s30, 1
        %s322 = scalar_select %p321, %s30, 1
        %s323 = smul.addr %s322, 8
        %s324 = scalar_lea.vmem %s0, %s323
        %p325 = pneg %p51
        %p326 = pneg %p48
        %s327 = sand.u32 %s64, 1
        %s328 = scalar_lea.sflag [#allocation3], %s327
        %s329 = sand.u32 %s64, 1
        %s330 = smul.addr %s329, 8
        %s331 = scalar_lea.vmem [#allocation2], %s330
        %p332 = pneg %p77
        %p333 = pneg %p74
        %s334 = sand.u32 %s30, 1
        %s335 = scalar_lea.sflag [#allocation6], %s334
        %s336 = sand.u32 %s90, 1
        %s337 = smul.addr %s336, 8
        %s338 = scalar_lea.vmem [#allocation5], %s337
        %p339 = pneg %p103
        %p340 = pneg %p100
        %s341 = sand.u32 %s30, 1
        %s342 = scalar_lea.sflag [#allocation6], %s341
        %s343 = sand.u32 %s116, 1
        %s344 = smul.addr %s343, 64
        %s345 = scalar_lea.vmem [#allocation7], %s344
        %p346 = pneg %p129
        %p347 = pneg %p126
        %p348 = pneg %p150
        %p349 = pneg %p147
        %p350 = pneg %p176
        %p351 = pneg %p173
        %s352 = sand.u32 %s163, 1
        %s353 = scalar_lea.sflag [#allocation4], %s352
        %s354 = sand.u32 %s163, 1
        %s355 = smul.addr %s354, 8
        %s356 = scalar_lea.vmem [#allocation8], %s355
        %p357 = pneg %p202
        %p358 = pneg %p199
        %s359 = sand.u32 %s189, 1
        %s360 = scalar_lea.sflag [#allocation10], %s359
        %s361 = sand.u32 %s189, 1
        %s362 = smul.addr %s361, 8
        %s363 = scalar_lea.vmem [#allocation9], %s362
        %p364 = scmp.lt.s32.totalorder %s30, 1
        %s365 = scalar_select %p364, %s30, 1
        %s366 = smul.addr %s365, 8
        %s367 = scalar_lea.vmem %s0, %s366
        %v368 = vld [vmem:[%s367] sm:$0xff]
        %v369 = vld [vmem:[%s298] sm:$0xff]
        %v370 = vld [vmem:[%s307] sm:$0xff]
        %v371 = vld [vmem:[%s316] sm:$0xff]
        %v372 = vmul.f32 %v371, %v369
        %s373 = scalar_lea.vmem %s316, 32 [#allocation7]
        %v374 = vld [vmem:[%s373] sm:$0xff]
        %v375 = vmul.f32 %v374, %v368
        %v376 = vadd.f32 %v372, %v375
        %v377 = vld [vmem:[%s4] sm:$0x1]
        %v379 = vlaneseq
        %v380 = vshrl.u32 %v379, 7
        %v381 = vsub.s32 0, %v380
        %v382 = vrot.slane %v377, %v381
        %v384 = vadd.f32 %v376, %v382
        %v385 = vmul.f32 %v384, 0.5
        %v386 = vtanh.pop %v385
        %v387 = vadd.f32 %v386, 1.0
        %v388 = vmul.f32 %v387, 0.5
        %s389 = scalar_lea.vmem %s316, 8 [#allocation7]
        %v390 = vld [vmem:[%s389] sm:$0xff]
        %v391 = vmul.f32 %v390, %v369
        %s392 = scalar_lea.vmem %s316, 40 [#allocation7]
        %v393 = vld [vmem:[%s392] sm:$0xff]
        %v394 = vmul.f32 %v393, %v368
        %v395 = vadd.f32 %v391, %v394
        %s396 = scalar_lea.vmem %s4, 1
        %v397 = vld [vmem:[%s396] sm:$0x1]
        %v399 = vlaneseq
        %v400 = vshrl.u32 %v399, 7
        %v401 = vsub.s32 0, %v400
        %v402 = vrot.slane %v397, %v401
        %v404 = vadd.f32 %v395, %v402
        %v405 = vmul.f32 %v404, 0.5
        %v406 = vtanh.pop %v405
        %v407 = vadd.f32 %v406, 1.0
        %v408 = vmul.f32 %v407, 0.5
        %s409 = scalar_lea.vmem %s316, 16 [#allocation7]
        %v410 = vld [vmem:[%s409] sm:$0xff]
        %v411 = vmul.f32 %v410, %v369
        %s412 = scalar_lea.vmem %s316, 48 [#allocation7]
        %v413 = vld [vmem:[%s412] sm:$0xff]
        %v414 = vmul.f32 %v413, %v368
        %v415 = vadd.f32 %v411, %v414
        %s416 = scalar_lea.vmem %s4, 2
        %v417 = vld [vmem:[%s416] sm:$0x1]
        %v419 = vlaneseq
        %v420 = vshrl.u32 %v419, 7
        %v421 = vsub.s32 0, %v420
        %v422 = vrot.slane %v417, %v421
        %v424 = vadd.f32 %v415, %v422
        %v425 = vtanh.pop %v424
        %s426 = scalar_lea.vmem %s316, 24 [#allocation7]
        %v427 = vld [vmem:[%s426] sm:$0xff]
        %v428 = vmul.f32 %v427, %v369
        %s429 = scalar_lea.vmem %s316, 56 [#allocation7]
        %v430 = vld [vmem:[%s429] sm:$0xff]
        %v431 = vmul.f32 %v430, %v368
        %v432 = vadd.f32 %v428, %v431
        %s433 = scalar_lea.vmem %s4, 3
        %v434 = vld [vmem:[%s433] sm:$0x1]
        %v436 = vlaneseq
        %v437 = vshrl.u32 %v436, 7
        %v438 = vsub.s32 0, %v437
        %v439 = vrot.slane %v434, %v438
        %v441 = vadd.f32 %v432, %v439
        %v442 = vmul.f32 %v441, 0.5
        %v443 = vtanh.pop %v442
        %v444 = vadd.f32 %v443, 1.0
        %v445 = vmul.f32 %v444, 0.5
        %v446 = vmul.f32 %v388, %v370
        %v447 = vmul.f32 %v408, %v425
        %v448 = vadd.f32 %v446, %v447
        %v449 = vtanh.pop %v448
        %v450 = vmul.f32 %v449, %v445
        %451 = vst [vmem:[%s356] sm:$0xff] %v450
        %452 = vst [vmem:[%s363] sm:$0xff] %v448
        %s453 = sand.u32 %s163, 1
        %s454 = scalar_lea.sflag [#allocation4], %s453
        %s455 = sand.u32 %s163, 1
        %s456 = smul.addr %s455, 8
        %s457 = scalar_lea.vmem [#allocation8], %s456
        %s458 = sand.u32 %s189, 1
        %s459 = scalar_lea.sflag [#allocation10], %s458
        %s460 = sand.u32 %s189, 1
        %s461 = smul.addr %s460, 8
        %s462 = scalar_lea.vmem [#allocation9], %s461
        // Predicated region
        $region53: #{tpu_custom_call.1} parent=39 // pred_check
          %p463 = pneg %p173
        $region54: #{tpu_custom_call.1} parent=39 // pred_check_branch
          %465 = sbr.rel (%p463) target = $region56
        $region55: #{tpu_custom_call.1} parent=39 // pred_region
          %s467 = ssub.s32 128, 128
          %468 = vsyncadd %s454, %s467
          %s469 = smul.addr %s30, 128
          %s470 = scalar_lea.hbm %s5, %s469
          %s472 = sshll.u32 %s457, 4
          %s473 = int_to_ptr.vmem [resolvable:$true] %s472
          %475 = dma.vmem_to_hbm [thread:$0]  %s473, 128, %s470, %s454
        $region56: #{tpu_custom_call.1} parent=39 // pred_fallthru
          _
        // Predicated region
        $region57: #{tpu_custom_call.1} parent=39 // pred_check
          %p476 = pneg %p199
        $region58: #{tpu_custom_call.1} parent=39 // pred_check_branch
          %478 = sbr.rel (%p476) target = $region60
        $region59: #{tpu_custom_call.1} parent=39 // pred_region
          %s480 = ssub.s32 128, 128
          %481 = vsyncadd %s459, %s480
          %s482 = smul.addr %s30, 128
          %s483 = scalar_lea.hbm %s6, %s482
          %s485 = sshll.u32 %s462, 4
          %s486 = int_to_ptr.vmem [resolvable:$true] %s485
          %488 = dma.vmem_to_hbm [thread:$0]  %s486, 128, %s483, %s459
        $region60: #{tpu_custom_call.1} parent=39 // pred_fallthru
          _
      $region40: #{tpu_custom_call.1} parent=5 // pred_fallthru
        _
      %p489 = scmp.le.s32.totalorder 2, %s25
      // Predicated region
      $region61: #{tpu_custom_call.1} parent=5 // pred_check
        %p490 = pneg %p489
      $region62: #{tpu_custom_call.1} parent=5 // pred_check_branch
        %492 = sbr.rel (%p490) target = $region64
      $region63: #{tpu_custom_call.1} parent=5 // pred_region
        %s493 = ssub.s32 %s25, 2
        // Predicated region
        $region65: #{tpu_custom_call.1} parent=63 // pred_check
          %p494 = pneg %p179
        $region66: #{tpu_custom_call.1} parent=63 // pred_check_branch
          %496 = sbr.rel (%p494) target = $region68
        $region67: #{tpu_custom_call.1} parent=63 // pred_region
          %s497 = sand.u32 %s164, 1
          %s498 = scalar_lea.sflag [#allocation4], %s497
          %s499 = sand.u32 %s164, 1
          %s500 = smul.addr %s499, 8
          %s501 = scalar_lea.vmem [#allocation8], %s500
          %502 = dma.done %s498, 128
        $region68: #{tpu_custom_call.1} parent=63 // pred_fallthru
          _
        // Predicated region
        $region69: #{tpu_custom_call.1} parent=63 // pred_check
          %p503 = pneg %p205
        $region70: #{tpu_custom_call.1} parent=63 // pred_check_branch
          %505 = sbr.rel (%p503) target = $region72
        $region71: #{tpu_custom_call.1} parent=63 // pred_region
          %s506 = sand.u32 %s190, 1
          %s507 = scalar_lea.sflag [#allocation10], %s506
          %s508 = sand.u32 %s190, 1
          %s509 = smul.addr %s508, 8
          %s510 = scalar_lea.vmem [#allocation9], %s509
          %511 = dma.done %s507, 128
        $region72: #{tpu_custom_call.1} parent=63 // pred_fallthru
          _
      $region64: #{tpu_custom_call.1} parent=5 // pred_fallthru
        _
    $region6: #{tpu_custom_call.1} parent=1 // loop_footer
      %s29 = sadd.s32 1, %s25
    $region7: #{tpu_custom_call.1} parent=1 // loop_footer_branch
      %24 = sbr.rel target = $region3
    $region8: #{tpu_custom_call.1} parent=1 // loop_exit
      _
    %512 = vsyncpa [#allocation3], 1
    %s513 = scalar_lea.sflag [#allocation3], 1
    %514 = vsyncpa %s513, 1
    %515 = vsyncpa [#allocation6], 1
    %s516 = scalar_lea.sflag [#allocation6], 1
    %517 = vsyncpa %s516, 1
    %518 = vsyncpa [#allocation4], 1
    %s519 = scalar_lea.sflag [#allocation4], 1
    %520 = vsyncpa %s519, 1
    %521 = vsyncpa [#allocation10], 1
    %s522 = scalar_lea.sflag [#allocation10], 1
    %523 = vsyncpa %s522, 1

</llo_original>
